<compile_context>
chip_gen: v6e
topology: v6e:2x2x1
jax: 0.10.0
libtpu: 0.0.40
codegen_flags: <defaults>
</compile_context>

<pallas_src>
import functools

import jax
import jax.numpy as jnp
from jax.experimental import pallas as pl
from jax.experimental.pallas import tpu as pltpu

EPS = 1e-5

_MAX_TILE_ROWS = 1024          # >=512 rows already reaches ~85% of HBM roofline
_TARGET_GRID_STEPS = 8         # keep the BlockSpec pipeline full / split across TCs
_MIN_SPLIT_TILE_ROWS = 256     # don't shrink tiles below this just to add grid steps


def _vmem_budgets():
    """(vmem_limit_bytes, tile_budget_bytes), generation-aware.

    v7x has only 64 MiB physical VMEM per TensorCore -> stay at 32/24 MiB there.
    v5e/v6e have 128 MiB -> 48/40 MiB is safe and still raises the scoped default
    (16 MiB on v5e, 32 MiB on v6e).  Unknown / query failure -> conservative values
    that are safe on every generation.
    """
    conservative = (32 * 1024 * 1024, 24 * 1024 * 1024)
    try:
        cap = getattr(pltpu.get_tpu_info(), "vmem_capacity_bytes", None)
    except Exception:  # not on TPU / query unavailable at trace time
        return conservative
    if cap is None or cap < 100 * 1024 * 1024:
        return conservative                      # v7x-class (64 MiB) or unknown
    return (48 * 1024 * 1024, 40 * 1024 * 1024)  # v5e / v6e (128 MiB)


def _round_up(n: int, m: int) -> int:
    return -(-n // m) * m


def _pick_tile_rows(rows: int, d: int, in_itemsize: int, out_itemsize: int) -> int:
    """Largest sublane-aligned row tile that fits VMEM, capped to keep >=~8 grid steps."""
    # Sublane packing: 8 rows for 32-bit, 16 for bf16, 32 for int8/fp8.
    packing = 8 * max(1, 4 // max(1, in_itemsize))

    # Per tile-row VMEM bytes: 2 inputs + 1 output, each double-buffered, plus f32
    # temporaries inside the kernel (z for f32 inputs; for sub-32-bit inputs also the
    # upcast copies of both inputs and the pre-downcast f32 output).
    n_f32_temps = 2 if in_itemsize >= 4 else 5
    per_row = d * (2 * in_itemsize * 2 + out_itemsize * 2 + n_f32_temps * 4)

    _, tile_budget = _vmem_budgets()
    fit = max(packing, (tile_budget // per_row) // packing * packing)
    tile = min(fit, _MAX_TILE_ROWS)

    # Keep at least ~_TARGET_GRID_STEPS grid steps for inputs big enough to matter, so
    # the pipeline overlaps prefetch/compute/writeback and both v7x TCs get work.
    step_cap = max(_MIN_SPLIT_TILE_ROWS,
                   _round_up(pl.cdiv(rows, _TARGET_GRID_STEPS), packing))
    tile = min(tile, step_cap)

    # Never exceed what the (sublane-padded) input actually needs.
    rows_padded = _round_up(rows, packing)
    return max(packing, min(tile, rows_padded))


def _residual_ln_kernel(alpha_ref, bias_ref, x_ref, s_ref, o_ref, *, approx_recip):
    """One row-tile: residual add + LayerNorm (unbiased std, scalar affine), single pass."""
    # TODO(synk): dropout is applied in eval mode (identity); training-mode stochastic
    # dropout would use pltpu.prng_seed / pltpu.stateful_bernoulli here.
    z = x_ref[...].astype(jnp.float32) + s_ref[...].astype(jnp.float32)
    d = z.shape[-1]

    # One read pass over z: row sums of z and z*z.
    sum_z = jnp.sum(z, axis=-1, keepdims=True)
    sum_zz = jnp.sum(z * z, axis=-1, keepdims=True)
    mean = sum_z * jnp.float32(1.0 / d)

    # Unbiased (ddof=1) variance, matching torch.Tensor.std; clamp guards tiny negative
    # values from the one-pass form, and max(d-1, 1) guards D == 1.
    var = jnp.maximum(sum_zz - sum_z * mean, 0.0) * jnp.float32(1.0 / max(d - 1, 1))
    std = jnp.sqrt(var)

    # Per-row reciprocal; approx=True routes to the EUP (~1e-3 rel err) if acceptable.
    inv = pl.reciprocal(std + jnp.float32(EPS), approx=approx_recip)
    scale = alpha_ref[0, 0] * inv                 # fold alpha into the per-row scale
    shift = bias_ref[0, 0] - mean * scale         # fold (bias - mean*scale)
    o_ref[...] = (z * scale + shift).astype(o_ref.dtype)


@functools.partial(jax.jit, static_argnames=("tile_rows", "out_dtype", "approx_recip"))
def residual_connection(x, sublayer_out, alpha, bias, *,
                        tile_rows=None, out_dtype=None, approx_recip=False):
    """x, sublayer_out: [B, S, D]; alpha, bias: scalar affine params (shape (1,)).

    out_dtype: optional narrower output dtype (e.g. jnp.bfloat16) to cut store traffic.
    """
    B, S, D = x.shape
    rows = B * S
    out_dtype = x.dtype if out_dtype is None else jnp.dtype(out_dtype)

    x2 = x.reshape(rows, D)
    s2 = sublayer_out.reshape(rows, D)
    alpha2 = jnp.asarray(alpha, jnp.float32).reshape(1, 1)
    bias2 = jnp.asarray(bias, jnp.float32).reshape(1, 1)

    if tile_rows is None:
        tile_rows = _pick_tile_rows(rows, D, x.dtype.itemsize, out_dtype.itemsize)

    grid = (pl.cdiv(rows, tile_rows),)  # ragged trailing block handled by Pallas

    vmem_limit, _ = _vmem_budgets()

    out2 = pl.pallas_call(
        functools.partial(_residual_ln_kernel, approx_recip=approx_recip),
        out_shape=jax.ShapeDtypeStruct((rows, D), out_dtype),
        grid=grid,
        in_specs=[
            pl.BlockSpec((1, 1), lambda i: (0, 0), memory_space=pltpu.SMEM),  # alpha
            pl.BlockSpec((1, 1), lambda i: (0, 0), memory_space=pltpu.SMEM),  # bias
            pl.BlockSpec((tile_rows, D), lambda i: (i, 0)),                   # x
            pl.BlockSpec((tile_rows, D), lambda i: (i, 0)),                   # sublayer(x)
        ],
        out_specs=pl.BlockSpec((tile_rows, D), lambda i: (i, 0)),
        compiler_params=pltpu.CompilerParams(
            dimension_semantics=("parallel",),
            vmem_limit_bytes=vmem_limit,
        ),
    )(alpha2, bias2, x2, s2)

    return out2.reshape(B, S, D)


def _reference(x, sublayer_out, alpha, bias):
    z = x.astype(jnp.float32) + sublayer_out.astype(jnp.float32)
    mean = jnp.mean(z, axis=-1, keepdims=True)
    std = jnp.std(z, axis=-1, keepdims=True, ddof=1)
    norm = (z - mean) / (std + EPS)
    return alpha * norm + bias


if __name__ == "__main__":
    key = jax.random.PRNGKey(0)
    kx, _ = jax.random.split(key)

    # Small demo shape; D is kept a multiple of 128 so stores are lane-dense
    # (D < 128 or non-multiples would hit the slow masked-store path).
    B, S, D = 2, 8, 128
    x = jax.random.normal(kx, (B, S, D), dtype=jnp.float32)

    # "sublayer" callable: a deterministic elementwise map (glue in plain JAX).
    sublayer = lambda t: jnp.tanh(t)
    sub_out = sublayer(x)

    # LayerNormalization.__init__: alpha = ones(1), bias = zeros(1)
    alpha = jnp.ones((1,), jnp.float32)
    bias = jnp.zeros((1,), jnp.float32)

    out = residual_connection(x, sub_out, alpha, bias)
    out = jax.block_until_ready(out)

    ref = _reference(x, sub_out, alpha[0], bias[0])
    assert out.shape == (B, S, D)
    assert jnp.allclose(out, ref, atol=1e-5, rtol=1e-5), "mismatch vs reference"

    print("KERNEL_OK")
</pallas_src>

<mosaic_0001>
module attributes {stable_mosaic.version = 11 : i64} {
  func.func @_residual_ln_kernel(%arg0: i32, %arg1: memref<1x1xf32, #tpu.memory_space<smem>>, %arg2: memref<1x1xf32, #tpu.memory_space<smem>>, %arg3: memref<16x128xf32, #tpu.memory_space<vmem>>, %arg4: memref<16x128xf32, #tpu.memory_space<vmem>>, %arg5: memref<16x128xf32, #tpu.memory_space<vmem>>) attributes {dimension_semantics = [#tpu.dimension_semantics<parallel>], iteration_bounds = array<i64: 1>, scalar_prefetch = 0 : i64, scratch_operands = 0 : i64, tpu.core_type = #tpu.core_type<tc>, window_params = [{transform_indices = @transform_0, window_bounds = array<i64: 1, 1>}, {transform_indices = @transform_1, window_bounds = array<i64: 1, 1>}, {transform_indices = @transform_2, window_bounds = array<i64: 16, 128>}, {transform_indices = @transform_3, window_bounds = array<i64: 16, 128>}, {transform_indices = @transform_4, window_bounds = array<i64: 16, 128>}]} {
    %c0 = arith.constant 0 : index
    %c0_0 = arith.constant 0 : index
    %0 = vector.load %arg3[%c0, %c0_0] : memref<16x128xf32, #tpu.memory_space<vmem>>, vector<16x128xf32>
    %c0_1 = arith.constant 0 : index
    %c0_2 = arith.constant 0 : index
    %1 = vector.load %arg4[%c0_1, %c0_2] : memref<16x128xf32, #tpu.memory_space<vmem>>, vector<16x128xf32>
    %2 = arith.addf %0, %1 : vector<16x128xf32>
    %cst = arith.constant dense<0.000000e+00> : vector<16xf32>
    %3 = vector.multi_reduction <add>, %2, %cst [1] : vector<16x128xf32> to vector<16xf32>
    %4 = vector.shape_cast %3 : vector<16xf32> to vector<16x1xf32>
    %5 = arith.mulf %2, %2 : vector<16x128xf32>
    %cst_3 = arith.constant dense<0.000000e+00> : vector<16xf32>
    %6 = vector.multi_reduction <add>, %5, %cst_3 [1] : vector<16x128xf32> to vector<16xf32>
    %7 = vector.shape_cast %6 : vector<16xf32> to vector<16x1xf32>
    %cst_4 = arith.constant 7.812500e-03 : f32
    %8 = vector.broadcast %cst_4 : f32 to vector<16x1xf32>
    %9 = arith.mulf %4, %8 : vector<16x1xf32>
    %10 = arith.mulf %4, %9 : vector<16x1xf32>
    %11 = arith.subf %7, %10 : vector<16x1xf32>
    %cst_5 = arith.constant 0.000000e+00 : f32
    %12 = vector.broadcast %cst_5 : f32 to vector<16x1xf32>
    %13 = arith.maximumf %11, %12 : vector<16x1xf32>
    %cst_6 = arith.constant 0.00787401571 : f32
    %14 = vector.broadcast %cst_6 : f32 to vector<16x1xf32>
    %15 = arith.mulf %13, %14 : vector<16x1xf32>
    %16 = math.sqrt %15 : vector<16x1xf32>
    %cst_7 = arith.constant 9.99999974E-6 : f32
    %17 = vector.broadcast %cst_7 : f32 to vector<16x1xf32>
    %18 = arith.addf %16, %17 : vector<16x1xf32>
    %19 = tpu.reciprocal %18 : vector<16x1xf32> -> vector<16x1xf32>
    %c0_8 = arith.constant 0 : index
    %c0_9 = arith.constant 0 : index
    %20 = memref.load %arg1[%c0_8, %c0_9] : memref<1x1xf32, #tpu.memory_space<smem>>
    %21 = vector.broadcast %20 : f32 to vector<16x1xf32>
    %22 = arith.mulf %21, %19 : vector<16x1xf32>
    %c0_10 = arith.constant 0 : index
    %c0_11 = arith.constant 0 : index
    %23 = memref.load %arg2[%c0_10, %c0_11] : memref<1x1xf32, #tpu.memory_space<smem>>
    %24 = arith.mulf %9, %22 : vector<16x1xf32>
    %25 = vector.broadcast %23 : f32 to vector<16x1xf32>
    %26 = arith.subf %25, %24 : vector<16x1xf32>
    %27 = vector.broadcast %22 : vector<16x1xf32> to vector<16x128xf32>
    %28 = arith.mulf %2, %27 : vector<16x128xf32>
    %29 = vector.broadcast %26 : vector<16x1xf32> to vector<16x128xf32>
    %30 = arith.addf %28, %29 : vector<16x128xf32>
    %c0_12 = arith.constant 0 : index
    %c0_13 = arith.constant 0 : index
    %31 = vector.load %arg5[%c0_12, %c0_13] : memref<16x128xf32, #tpu.memory_space<vmem>>, vector<16x128xf32>
    tpu.vector_store %arg5[%c0_12, %c0_13], %30 {strides = array<i32>} : memref<16x128xf32, #tpu.memory_space<vmem>>, vector<16x128xf32>,
    return
  }
  func.func @transform_0(%arg0: i32) -> (i32, i32) {
    %c0_i32 = arith.constant 0 : i32
    %c0_i32_0 = arith.constant 0 : i32
    %c0_i32_1 = arith.constant 0 : i32
    return %c0_i32, %c0_i32_0 : i32, i32
  }
  func.func @transform_1(%arg0: i32) -> (i32, i32) {
    %c0_i32 = arith.constant 0 : i32
    %c0_i32_0 = arith.constant 0 : i32
    %c0_i32_1 = arith.constant 0 : i32
    return %c0_i32, %c0_i32_0 : i32, i32
  }
  func.func @transform_2(%arg0: i32) -> (i32, i32) {
    %c0_i32 = arith.constant 0 : i32
    %c0_i32_0 = arith.constant 0 : i32
    return %arg0, %c0_i32 : i32, i32
  }
  func.func @transform_3(%arg0: i32) -> (i32, i32) {
    %c0_i32 = arith.constant 0 : i32
    %c0_i32_0 = arith.constant 0 : i32
    return %arg0, %c0_i32 : i32, i32
  }
  func.func @transform_4(%arg0: i32) -> (i32, i32) {
    %c0_i32 = arith.constant 0 : i32
    %c0_i32_0 = arith.constant 0 : i32
    return %arg0, %c0_i32 : i32, i32
  }
}

</mosaic_0001>

<llo_original>
// kernel: residual_connection.1
$region0: #{residual_connection.1}
  #allocation0 [shape = 'u32[]', space=smem, size = 0x4, offset = 0x4, fixed_abs, tag = 'smem constant byte address 0x4 - core index']
  #allocation1 [shape = 'u32[144,128]{1,0:T(1,128)}', space=vmem, size = 0x12000, scoped, tag = 'internal scratch']
  #allocation2 [shape = 'f32[1,1]{1,0:T(1,128)S(6)}', space=smem, size = 0x200, scoped, tag = 'scoped memory for residual_connection.1']
  #allocation3 [shape = 'f32[1,1]{1,0:T(1,128)S(6)}', space=smem, size = 0x200, scoped, tag = 'scoped memory for residual_connection.1']
  %s0 = inlined_call_operand.<no memory space> [shape: f32[1,1], index: 0, kind: input, shape index: {}]
  %s1 = inlined_call_operand.<no memory space> [shape: f32[1,1], index: 1, kind: input, shape index: {}]
  %s2 = inlined_call_operand.hbm [shape: f32[16,128], index: 2, kind: input, shape index: {}]
  %s3 = inlined_call_operand.hbm [shape: f32[16,128], index: 3, kind: input, shape index: {}]
  %s4 = inlined_call_operand.hbm [shape: f32[16,128], index: 4, kind: output, shape index: {}]
  %s5 = sld [smem:[#allocation0]]
  $region34: #{residual_connection.1} parent=0
    _
  %s7 = ssub.s32 1, %s5
  %s8 = scalar_select 0, %s7, %s5
  %9 = sst [smem:[#allocation2]] %s0
  %10 = sst [smem:[#allocation3]] %s1
  $region1: #{residual_connection.1} parent=0
    #allocation4 [shape = 'u8[8192]{0}', space=vmem, size = 0x2000, scoped, tag = 'input window, operand 2, single buffered']
    #allocation5 [shape = 's32[1]{0}', space=sflag, size = 0x4, scoped, tag = 'scoped memory for residual_connection.1']
    #allocation6 [shape = 's32[1]{0}', space=sflag, size = 0x4, scoped, tag = 'scoped memory for residual_connection.1']
    #allocation7 [shape = 'u8[8192]{0}', space=vmem, size = 0x2000, scoped, tag = 'input window, operand 3, single buffered']
    #allocation8 [shape = 's32[1]{0}', space=sflag, size = 0x4, scoped, tag = 'scoped memory for residual_connection.1']
    #allocation9 [shape = 'u8[8192]{0}', space=vmem, size = 0x2000, scoped, tag = 'output window, operand 0, single buffered']
    %11 = vsyncpa [#allocation5], 0
    %12 = vsyncpa [#allocation8], 0
    %13 = vsyncpa [#allocation6], 0
    // Predicated region
    $region2: #{residual_connection.1} parent=1 // pred_check
      _
    $region3: #{residual_connection.1} parent=1 // pred_check_branch
      %15 = sbr.rel (0) target = $region5
    $region4: #{residual_connection.1} parent=1 // pred_region
      _
    $region5: #{residual_connection.1} parent=1 // pred_fallthru
      _
    // Predicated region
    $region6: #{residual_connection.1} parent=1 // pred_check
      _
    $region7: #{residual_connection.1} parent=1 // pred_check_branch
      %17 = sbr.rel (0) target = $region9
    $region8: #{residual_connection.1} parent=1 // pred_region
      _
    $region9: #{residual_connection.1} parent=1 // pred_fallthru
      _
    // Predicated region
    $region10: #{residual_connection.1} parent=1 // pred_check
      _
    $region11: #{residual_connection.1} parent=1 // pred_check_branch
      %19 = sbr.rel (0) target = $region13
    $region12: #{residual_connection.1} parent=1 // pred_region
      %s21 = ssub.s32 256, 256
      %22 = vsyncadd [#allocation5], %s21
      %s23 = sshll.u32 [#allocation4], 4
      %s24 = int_to_ptr.vmem [resolvable:$true] %s23
      %29 = dma.hbm_to_vmem [thread:$0]  %s2, 256, %s24, [#allocation5], 128, 128, 8
    $region13: #{residual_connection.1} parent=1 // pred_fallthru
      _
    // Predicated region
    $region14: #{residual_connection.1} parent=1 // pred_check
      _
    $region15: #{residual_connection.1} parent=1 // pred_check_branch
      %31 = sbr.rel (0) target = $region17
    $region16: #{residual_connection.1} parent=1 // pred_region
      %s33 = ssub.s32 256, 256
      %34 = vsyncadd [#allocation8], %s33
      %s35 = sshll.u32 [#allocation7], 4
      %s36 = int_to_ptr.vmem [resolvable:$true] %s35
      %41 = dma.hbm_to_vmem [thread:$0]  %s3, 256, %s36, [#allocation8], 128, 128, 8
    $region17: #{residual_connection.1} parent=1 // pred_fallthru
      _
    // Predicated region
    $region18: #{residual_connection.1} parent=1 // pred_check
      _
    $region19: #{residual_connection.1} parent=1 // pred_check_branch
      %43 = sbr.rel (0) target = $region21
    $region20: #{residual_connection.1} parent=1 // pred_region
      %44 = dma.done [#allocation5], 256
    $region21: #{residual_connection.1} parent=1 // pred_fallthru
      _
    // Predicated region
    $region22: #{residual_connection.1} parent=1 // pred_check
      _
    $region23: #{residual_connection.1} parent=1 // pred_check_branch
      %46 = sbr.rel (0) target = $region25
    $region24: #{residual_connection.1} parent=1 // pred_region
      %47 = dma.done [#allocation8], 256
    $region25: #{residual_connection.1} parent=1 // pred_fallthru
      _
    %v48 = vld [vmem:[#allocation4] sm:$0xff]
    %v49 = vld [vmem:[#allocation4 + $0x8] sm:$0xff]
    %v50 = vld [vmem:[#allocation7] sm:$0xff]
    %v51 = vld [vmem:[#allocation7 + $0x8] sm:$0xff]
    %v52 = vadd.f32 %v48, %v50
    %v53 = vadd.f32 %v49, %v51
    %54 = vadd.xlane.f32.xlu0 %v52
    %v55 = vpop.xlane.xlu0 %54
    %56 = vadd.xlane.f32.xlu0 %v53
    %v57 = vpop.xlane.xlu0 %56
    %v58 = vmul.f32 %v52, %v52
    %v59 = vmul.f32 %v53, %v53
    %60 = vadd.xlane.f32.xlu0 %v58
    %v61 = vpop.xlane.xlu0 %60
    %62 = vadd.xlane.f32.xlu0 %v59
    %v63 = vpop.xlane.xlu0 %62
    %v64 = vmul.f32 %v55, 0.0078125
    %v65 = vmul.f32 %v57, 0.0078125
    %v66 = vmul.f32 %v55, %v64
    %v67 = vmul.f32 %v57, %v65
    %v68 = vsub.f32 %v61, %v66
    %v69 = vsub.f32 %v63, %v67
    %v70 = vmax.f32 %v68, 0.0
    %v71 = vmax.f32 %v69, 0.0
    %v72 = vmul.f32 %v70, 0.007874016
    %v73 = vmul.f32 %v71, 0.007874016
    %v74 = vrsqrt.pop %v72
    %v75 = vmul.f32 %v72, %v74
    %vm76 = vcmp.eq.f32.partialorder %v72, inf
    %v77 = vsel %vm76, %v72, %v75
    %vm78 = vcmp.eq.f32.partialorder %v72, 0.0
    %v79 = vand.u32 %v72, 2147483648
    %v80 = vsel %vm78, %v79, %v77
    %v81 = vrsqrt.pop %v73
    %v82 = vmul.f32 %v73, %v81
    %vm83 = vcmp.eq.f32.partialorder %v73, inf
    %v84 = vsel %vm83, %v73, %v82
    %vm85 = vcmp.eq.f32.partialorder %v73, 0.0
    %v86 = vand.u32 %v73, 2147483648
    %v87 = vsel %vm85, %v86, %v84
    %v88 = vadd.f32 %v80, 1e-05
    %v89 = vadd.f32 %v87, 1e-05
    %v90 = vrcp.pop %v88
    %v91 = vrcp.pop %v89
    %s92 = sld [smem:[#allocation2]]
    %v93 = vstv %s92
    %v94 = vmul.f32 %v93, %v90
    %v95 = vmul.f32 %v93, %v91
    %s96 = sld [smem:[#allocation3]]
    %v97 = vmul.f32 %v64, %v94
    %v98 = vmul.f32 %v65, %v95
    %v99 = vstv %s96
    %v100 = vsub.f32 %v99, %v97
    %v101 = vsub.f32 %v99, %v98
    %v102 = vmul.f32 %v52, %v94
    %v103 = vmul.f32 %v53, %v95
    %v104 = vadd.f32 %v102, %v100
    %v105 = vadd.f32 %v103, %v101
    %106 = vst [vmem:[#allocation9] sm:$0xff] %v104
    %107 = vst [vmem:[#allocation9 + $0x8] sm:$0xff] %v105
    // Predicated region
    $region26: #{residual_connection.1} parent=1 // pred_check
      _
    $region27: #{residual_connection.1} parent=1 // pred_check_branch
      %109 = sbr.rel (0) target = $region29
    $region28: #{residual_connection.1} parent=1 // pred_region
      %s111 = ssub.s32 256, 256
      %112 = vsyncadd [#allocation6], %s111
      %s113 = sshll.u32 [#allocation9], 4
      %s114 = int_to_ptr.vmem [resolvable:$true] %s113
      %119 = dma.vmem_to_hbm [thread:$0]  %s114, 256, %s4, [#allocation6], 128, 128, 8
    $region29: #{residual_connection.1} parent=1 // pred_fallthru
      _
    // Predicated region
    $region30: #{residual_connection.1} parent=1 // pred_check
      _
    $region31: #{residual_connection.1} parent=1 // pred_check_branch
      %121 = sbr.rel (0) target = $region33
    $region32: #{residual_connection.1} parent=1 // pred_region
      %122 = dma.done [#allocation6], 256
    $region33: #{residual_connection.1} parent=1 // pred_fallthru
      _
    %123 = vsyncpa [#allocation5], 1
    %124 = vsyncpa [#allocation8], 1
    %125 = vsyncpa [#allocation6], 1

</llo_original>
